<compile_context>
chip_gen: v5e
topology: v5e:2x2
jax: 0.10.0
libtpu: 0.0.40
codegen_flags: <defaults>
</compile_context>

<pallas_src>
import functools

import jax
import jax.numpy as jnp
from jax.experimental import pallas as pl
from jax.experimental.pallas import tpu as pltpu


def _round_up(n, m):
    return ((n + m - 1) // m) * m


def channel_gate_kernel(x_ref, w1_ref, b1_ref, w2_ref, b2_ref, o_ref, *, inv_hw):
    # x_ref block: (Bb, C, HW) -- Bb whole images per grid step.
    x = x_ref[...]                                              # storage dtype

    # --- global average pool over spatial (accumulate in f32) ---
    pooled = jnp.sum(x.astype(jnp.float32), axis=-1) * inv_hw   # (Bb, C)

    # --- MLP: Linear -> ReLU -> Linear (f32; tiny next to the DMA traffic) ---
    h = jnp.dot(pooled, w1_ref[...],
                preferred_element_type=jnp.float32) + b1_ref[...]      # (Bb, Cr)
    h = jnp.maximum(h, 0.0)
    att = jnp.dot(h, w2_ref[...],
                  preferred_element_type=jnp.float32) + b2_ref[...]    # (Bb, C)

    # --- sigmoid gate, broadcast over spatial, scale the slab ---
    scale = jax.nn.sigmoid(att).astype(x.dtype)                 # (Bb, C)
    o_ref[...] = x * scale[:, :, None]


def channel_gate(x, w1, b1, w2, b2, *, target_block_bytes=2 << 20):
    """ChannelGate forward.

    x: (B, C, H, W), float32 or bfloat16 (output matches x.dtype).
    Weights stored as (in, out) (transposed vs torch); biases (1, out); f32.
    """
    B, C, H, W = x.shape
    HW = H * W
    Cr = w1.shape[1]
    itemsize = jnp.dtype(x.dtype).itemsize

    # --- choose how many images to pack per grid step -----------------------
    # VMEM internally pads the minor (spatial) dim up to 128 lanes.
    per_image_vmem = C * _round_up(HW, 128) * itemsize
    per_image_hbm = C * HW * itemsize
    weight_bytes = 4 * (C * Cr + Cr + Cr * C + C)

    vmem_budget = 48 << 20        # headroom under v7x's 64 MiB physical VMEM
    # in + out slabs, each double-buffered -> 4 copies resident at once.
    max_bb_vmem = (vmem_budget - 2 * weight_bytes - (2 << 20)) // (4 * per_image_vmem)
    if max_bb_vmem < 1:
        # TODO(synk): two-pass (pooled reduce, then HW-tiled scale) fallback for
        # images whose full (C, H*W) slice does not fit VMEM.
        raise ValueError(
            "ChannelGate: a single (C, H*W) image slice does not fit VMEM; "
            "spatial-tiling fallback not implemented.")
    bb_target = max(1, target_block_bytes // max(per_image_hbm, 1))
    Bb = int(min(B, bb_target, max_bb_vmem))
    num_blocks = pl.cdiv(B, Bb)   # ragged last batch block is masked by Pallas

    vmem_needed = 4 * Bb * per_image_vmem + 2 * weight_bytes + (2 << 20)
    vmem_limit = int(min(max(vmem_needed, 32 << 20), vmem_budget))

    # Free view: merge the contiguous minor dims H, W -> HW (no pad, no copy).
    x_flat = x.reshape(B, C, HW)

    kernel = functools.partial(channel_gate_kernel, inv_hw=1.0 / float(HW))

    cost = pl.CostEstimate(
        flops=int(2 * B * C * HW + 4 * B * C * Cr),
        transcendentals=int(B * C),
        bytes_accessed=int(2 * B * C * HW * itemsize + weight_bytes),
    )

    out_flat = pl.pallas_call(
        kernel,
        out_shape=jax.ShapeDtypeStruct((B, C, HW), x.dtype),
        grid_spec=pltpu.PrefetchScalarGridSpec(
            num_scalar_prefetch=0,
            grid=(num_blocks,),
            in_specs=[
                pl.BlockSpec((Bb, C, HW), lambda i: (i, 0, 0)),
                # Constant block index -> weights stay resident across steps.
                pl.BlockSpec((C, Cr), lambda i: (0, 0)),
                pl.BlockSpec((1, Cr), lambda i: (0, 0)),
                pl.BlockSpec((Cr, C), lambda i: (0, 0)),
                pl.BlockSpec((1, C), lambda i: (0, 0)),
            ],
            out_specs=pl.BlockSpec((Bb, C, HW), lambda i: (i, 0, 0)),
        ),
        compiler_params=pltpu.CompilerParams(
            dimension_semantics=("parallel",),
            vmem_limit_bytes=vmem_limit),
        cost_estimate=cost,
    )(x_flat, w1, b1, w2, b2)

    return out_flat.reshape(B, C, H, W)


def init_params(key, gate_channels, reduction_ratio):
    """Deterministic init mimicking torch.nn.Linear defaults (U(-1/sqrt(in), 1/sqrt(in)))."""
    C = gate_channels
    Cr = gate_channels // reduction_ratio
    k1, k2, k3, k4 = jax.random.split(key, 4)
    bound1 = 1.0 / jnp.sqrt(C)
    bound2 = 1.0 / jnp.sqrt(Cr)
    # stored as (in, out) so the kernel can do row-vector @ weight
    w1 = jax.random.uniform(k1, (C, Cr), jnp.float32, -bound1, bound1)
    b1 = jax.random.uniform(k2, (1, Cr), jnp.float32, -bound1, bound1)
    w2 = jax.random.uniform(k3, (Cr, C), jnp.float32, -bound2, bound2)
    b2 = jax.random.uniform(k4, (1, C), jnp.float32, -bound2, bound2)
    return w1, b1, w2, b2


def channel_gate_ref(x, w1, b1, w2, b2):
    """Pure-JAX reference matching the PyTorch forward (pool_types=['avg'])."""
    B, C, H, W = x.shape
    pooled = jnp.mean(x.reshape(B, C, H * W), axis=-1)          # (B, C)
    h = jnp.maximum(pooled @ w1 + b1, 0.0)                      # (B, Cr)
    att = h @ w2 + b2                                           # (B, C)
    scale = jax.nn.sigmoid(att)[:, :, None, None]               # (B, C, 1, 1)
    return x * scale


if __name__ == "__main__":
    B, C, H, W = 2, 32, 14, 14   # HW = 196 (non-multiple of 128 handled natively)
    reduction_ratio = 4          # hidden = 8

    key = jax.random.PRNGKey(0)
    kx, kp = jax.random.split(key)
    x = jax.random.normal(kx, (B, C, H, W), jnp.float32)
    w1, b1, w2, b2 = init_params(kp, C, reduction_ratio)

    # --- float32 path ---
    out = jax.block_until_ready(channel_gate(x, w1, b1, w2, b2))
    ref = channel_gate_ref(x, w1, b1, w2, b2)
    assert out.shape == ref.shape and out.dtype == x.dtype
    assert jnp.allclose(out, ref, atol=1e-4, rtol=1e-4), "f32 mismatch vs reference"

    # --- bfloat16 storage path (pool/MLP/sigmoid still f32 inside kernel) ---
    x_bf16 = x.astype(jnp.bfloat16)
    out_bf16 = jax.block_until_ready(channel_gate(x_bf16, w1, b1, w2, b2))
    ref_bf16 = channel_gate_ref(x_bf16.astype(jnp.float32), w1, b1, w2, b2)
    assert out_bf16.dtype == jnp.bfloat16
    assert jnp.allclose(out_bf16.astype(jnp.float32), ref_bf16,
                        atol=5e-2, rtol=5e-2), "bf16 mismatch vs reference"

    print("KERNEL_OK")
</pallas_src>

<mosaic_0001>
module attributes {stable_mosaic.version = 11 : i64} {
  func.func @channel_gate_kernel(%arg0: i32, %arg1: memref<2x32x196xf32, #tpu.memory_space<vmem>>, %arg2: memref<32x8xf32, #tpu.memory_space<vmem>>, %arg3: memref<1x8xf32, #tpu.memory_space<vmem>>, %arg4: memref<8x32xf32, #tpu.memory_space<vmem>>, %arg5: memref<1x32xf32, #tpu.memory_space<vmem>>, %arg6: memref<2x32x196xf32, #tpu.memory_space<vmem>>) attributes {dimension_semantics = [#tpu.dimension_semantics<parallel>], iteration_bounds = array<i64: 1>, scalar_prefetch = 0 : i64, scratch_operands = 0 : i64, tpu.core_type = #tpu.core_type<tc>, window_params = [{transform_indices = @transform_0, window_bounds = array<i64: 2, 32, 196>}, {pipeline_mode = #tpu.pipeline_mode<synchronous>, transform_indices = @transform_1, window_bounds = array<i64: 32, 8>}, {pipeline_mode = #tpu.pipeline_mode<synchronous>, transform_indices = @transform_2, window_bounds = array<i64: 1, 8>}, {pipeline_mode = #tpu.pipeline_mode<synchronous>, transform_indices = @transform_3, window_bounds = array<i64: 8, 32>}, {pipeline_mode = #tpu.pipeline_mode<synchronous>, transform_indices = @transform_4, window_bounds = array<i64: 1, 32>}, {transform_indices = @transform_5, window_bounds = array<i64: 2, 32, 196>}]} {
    %c0 = arith.constant 0 : index
    %c0_0 = arith.constant 0 : index
    %c0_1 = arith.constant 0 : index
    %0 = vector.load %arg1[%c0, %c0_0, %c0_1] : memref<2x32x196xf32, #tpu.memory_space<vmem>>, vector<2x32x196xf32>
    %cst = arith.constant dense<0.000000e+00> : vector<2x32xf32>
    %1 = vector.multi_reduction <add>, %0, %cst [2] : vector<2x32x196xf32> to vector<2x32xf32>
    %cst_2 = arith.constant 0.00510204071 : f32
    %2 = vector.broadcast %cst_2 : f32 to vector<2x32xf32>
    %3 = arith.mulf %1, %2 : vector<2x32xf32>
    %c0_3 = arith.constant 0 : index
    %c0_4 = arith.constant 0 : index
    %4 = vector.load %arg2[%c0_3, %c0_4] : memref<32x8xf32, #tpu.memory_space<vmem>>, vector<32x8xf32>
    %cst_5 = arith.constant dense<0.000000e+00> : vector<2x8xf32>
    %5 = tpu.matmul %3, %4, %cst_5 {dimension_numbers = #tpu.dot_dimension_numbers<[1], [0], [0], [1], [0, 0, 1, 1], [], []>} : vector<2x32xf32>, vector<32x8xf32>, vector<2x8xf32> -> vector<2x8xf32>
    %c0_6 = arith.constant 0 : index
    %c0_7 = arith.constant 0 : index
    %6 = vector.load %arg3[%c0_6, %c0_7] : memref<1x8xf32, #tpu.memory_space<vmem>>, vector<1x8xf32>
    %7 = vector.broadcast %6 : vector<1x8xf32> to vector<2x8xf32>
    %8 = arith.addf %5, %7 : vector<2x8xf32>
    %cst_8 = arith.constant 0.000000e+00 : f32
    %9 = vector.broadcast %cst_8 : f32 to vector<2x8xf32>
    %10 = arith.maximumf %8, %9 : vector<2x8xf32>
    %c0_9 = arith.constant 0 : index
    %c0_10 = arith.constant 0 : index
    %11 = vector.load %arg4[%c0_9, %c0_10] : memref<8x32xf32, #tpu.memory_space<vmem>>, vector<8x32xf32>
    %cst_11 = arith.constant dense<0.000000e+00> : vector<2x32xf32>
    %12 = tpu.matmul %10, %11, %cst_11 {dimension_numbers = #tpu.dot_dimension_numbers<[1], [0], [0], [1], [0, 0, 1, 1], [], []>} : vector<2x8xf32>, vector<8x32xf32>, vector<2x32xf32> -> vector<2x32xf32>
    %c0_12 = arith.constant 0 : index
    %c0_13 = arith.constant 0 : index
    %13 = vector.load %arg5[%c0_12, %c0_13] : memref<1x32xf32, #tpu.memory_space<vmem>>, vector<1x32xf32>
    %14 = vector.broadcast %13 : vector<1x32xf32> to vector<2x32xf32>
    %15 = arith.addf %12, %14 : vector<2x32xf32>
    %16 = arith.negf %15 : vector<2x32xf32>
    %17 = math.exp %16 : vector<2x32xf32>
    %cst_14 = arith.constant 1.000000e+00 : f32
    %18 = vector.broadcast %cst_14 : f32 to vector<2x32xf32>
    %19 = arith.addf %18, %17 : vector<2x32xf32>
    %20 = arith.divf %18, %19 : vector<2x32xf32>
    %21 = vector.shape_cast %20 : vector<2x32xf32> to vector<2x32x1xf32>
    %22 = vector.broadcast %21 : vector<2x32x1xf32> to vector<2x32x196xf32>
    %23 = arith.mulf %0, %22 : vector<2x32x196xf32>
    %c0_15 = arith.constant 0 : index
    %c0_16 = arith.constant 0 : index
    %c0_17 = arith.constant 0 : index
    %24 = vector.load %arg6[%c0_15, %c0_16, %c0_17] : memref<2x32x196xf32, #tpu.memory_space<vmem>>, vector<2x32x196xf32>
    tpu.vector_store %arg6[%c0_15, %c0_16, %c0_17], %23 {strides = array<i32>} : memref<2x32x196xf32, #tpu.memory_space<vmem>>, vector<2x32x196xf32>,
    return
  }
  func.func @transform_0(%arg0: i32) -> (i32, i32, i32) {
    %c0_i32 = arith.constant 0 : i32
    %c0_i32_0 = arith.constant 0 : i32
    %c0_i32_1 = arith.constant 0 : i32
    return %arg0, %c0_i32, %c0_i32_0 : i32, i32, i32
  }
  func.func @transform_1(%arg0: i32) -> (i32, i32) {
    %c0_i32 = arith.constant 0 : i32
    %c0_i32_0 = arith.constant 0 : i32
    %c0_i32_1 = arith.constant 0 : i32
    return %c0_i32, %c0_i32_0 : i32, i32
  }
  func.func @transform_2(%arg0: i32) -> (i32, i32) {
    %c0_i32 = arith.constant 0 : i32
    %c0_i32_0 = arith.constant 0 : i32
    %c0_i32_1 = arith.constant 0 : i32
    return %c0_i32, %c0_i32_0 : i32, i32
  }
  func.func @transform_3(%arg0: i32) -> (i32, i32) {
    %c0_i32 = arith.constant 0 : i32
    %c0_i32_0 = arith.constant 0 : i32
    %c0_i32_1 = arith.constant 0 : i32
    return %c0_i32, %c0_i32_0 : i32, i32
  }
  func.func @transform_4(%arg0: i32) -> (i32, i32) {
    %c0_i32 = arith.constant 0 : i32
    %c0_i32_0 = arith.constant 0 : i32
    %c0_i32_1 = arith.constant 0 : i32
    return %c0_i32, %c0_i32_0 : i32, i32
  }
  func.func @transform_5(%arg0: i32) -> (i32, i32, i32) {
    %c0_i32 = arith.constant 0 : i32
    %c0_i32_0 = arith.constant 0 : i32
    %c0_i32_1 = arith.constant 0 : i32
    return %arg0, %c0_i32, %c0_i32_0 : i32, i32, i32
  }
}

</mosaic_0001>

<llo_original>
// kernel: tpu_custom_call.1
$region0: #{tpu_custom_call.1}
  #allocation0 [shape = 'u32[]', space=smem, size = 0x4, offset = 0x4, fixed_abs, tag = 'smem constant byte address 0x4 - core index']
  #allocation1 [shape = 'u32[72,128]{1,0:T(1,128)}', space=vmem, size = 0x9000, scoped, tag = 'internal scratch']
  %s0 = inlined_call_operand.hbm [shape: f32[2,32,196], index: 0, kind: input, shape index: {}]
  %s1 = inlined_call_operand.vmem [shape: f32[32,8], index: 1, kind: input, shape index: {}]
  %s2 = inlined_call_operand.vmem [shape: f32[1,8], index: 2, kind: input, shape index: {}]
  %s3 = inlined_call_operand.vmem [shape: f32[8,32], index: 3, kind: input, shape index: {}]
  %s4 = inlined_call_operand.vmem [shape: f32[1,32], index: 4, kind: input, shape index: {}]
  %s5 = inlined_call_operand.hbm [shape: f32[2,32,196], index: 5, kind: output, shape index: {}]
  %s6 = sld [smem:[#allocation0]]
  $region34: #{tpu_custom_call.1} parent=0
    _
  %s8 = ssub.s32 1, %s6
  %s9 = scalar_select 0, %s8, %s6
  $region1: #{tpu_custom_call.1} parent=0
    #allocation2 [shape = 'u8[65536]{0}', space=vmem, size = 0x10000, scoped, tag = 'input window, operand 0, single buffered']
    #allocation3 [shape = 's32[1]{0}', space=sflag, size = 0x4, scoped, tag = 'scoped memory for tpu_custom_call.1']
    #allocation4 [shape = 's32[1]{0}', space=sflag, size = 0x4, scoped, tag = 'scoped memory for tpu_custom_call.1']
    #allocation5 [shape = 'u8[65536]{0}', space=vmem, size = 0x10000, scoped, tag = 'output window, operand 0, single buffered']
    %10 = vsyncpa [#allocation3], 0
    %11 = vsyncpa [#allocation4], 0
    // Predicated region
    $region2: #{tpu_custom_call.1} parent=1 // pred_check
      _
    $region3: #{tpu_custom_call.1} parent=1 // pred_check_branch
      %13 = sbr.rel (0) target = $region5
    $region4: #{tpu_custom_call.1} parent=1 // pred_region
      %15 = vsyncadd [#allocation3], 0
      %s16 = sshll.u32 %s0, 4
      %s17 = int_to_ptr.hbm [resolvable:$true] %s16
      %s18 = sshll.u32 [#allocation2], 4
      %s19 = int_to_ptr.vmem [resolvable:$true] %s18
      %24 = dma.hbm_to_vmem [thread:$0]  %s17, 2048, %s19, [#allocation3], 256, 256, 16
    $region5: #{tpu_custom_call.1} parent=1 // pred_fallthru
      _
    // Predicated region
    $region6: #{tpu_custom_call.1} parent=1 // pred_check
      _
    $region7: #{tpu_custom_call.1} parent=1 // pred_check_branch
      %26 = sbr.rel (0) target = $region9
    $region8: #{tpu_custom_call.1} parent=1 // pred_region
      _
    $region9: #{tpu_custom_call.1} parent=1 // pred_fallthru
      _
    // Predicated region
    $region10: #{tpu_custom_call.1} parent=1 // pred_check
      _
    $region11: #{tpu_custom_call.1} parent=1 // pred_check_branch
      %28 = sbr.rel (0) target = $region13
    $region12: #{tpu_custom_call.1} parent=1 // pred_region
      _
    $region13: #{tpu_custom_call.1} parent=1 // pred_fallthru
      _
    // Predicated region
    $region14: #{tpu_custom_call.1} parent=1 // pred_check
      _
    $region15: #{tpu_custom_call.1} parent=1 // pred_check_branch
      %30 = sbr.rel (0) target = $region17
    $region16: #{tpu_custom_call.1} parent=1 // pred_region
      _
    $region17: #{tpu_custom_call.1} parent=1 // pred_fallthru
      _
    // Predicated region
    $region18: #{tpu_custom_call.1} parent=1 // pred_check
      _
    $region19: #{tpu_custom_call.1} parent=1 // pred_check_branch
      %32 = sbr.rel (0) target = $region21
    $region20: #{tpu_custom_call.1} parent=1 // pred_region
      _
    $region21: #{tpu_custom_call.1} parent=1 // pred_fallthru
      _
    // Predicated region
    $region22: #{tpu_custom_call.1} parent=1 // pred_check
      _
    $region23: #{tpu_custom_call.1} parent=1 // pred_check_branch
      %34 = sbr.rel (0) target = $region25
    $region24: #{tpu_custom_call.1} parent=1 // pred_region
      %36 = dma.done [#allocation3], 2048
    $region25: #{tpu_custom_call.1} parent=1 // pred_fallthru
      _
    %v37 = vld [vmem:[#allocation2] sm:$0xff]
    %v38 = vld [vmem:[#allocation2 + $0x8] sm:$0xff]
    %v39 = vld [vmem:[#allocation2 + $0x10] sm:$0xff]
    %v40 = vld [vmem:[#allocation2 + $0x18] sm:$0xff]
    %v41 = vld [vmem:[#allocation2 + $0x20] sm:$0xff]
    %v42 = vld [vmem:[#allocation2 + $0x28] sm:$0xff]
    %v43 = vld [vmem:[#allocation2 + $0x30] sm:$0xff]
    %v44 = vld [vmem:[#allocation2 + $0x38] sm:$0xff]
    %v45 = vld [vmem:[#allocation2 + $0x40] sm:$0xff]
    %v46 = vld [vmem:[#allocation2 + $0x48] sm:$0xff]
    %v47 = vld [vmem:[#allocation2 + $0x50] sm:$0xff]
    %v48 = vld [vmem:[#allocation2 + $0x58] sm:$0xff]
    %v49 = vld [vmem:[#allocation2 + $0x60] sm:$0xff]
    %v50 = vld [vmem:[#allocation2 + $0x68] sm:$0xff]
    %v51 = vld [vmem:[#allocation2 + $0x70] sm:$0xff]
    %v52 = vld [vmem:[#allocation2 + $0x78] sm:$0xff]
    %vm53 = vcmask 556032
    %v54 = vsel %vm53, %v38, 0.0
    %v55 = vadd.f32 %v37, %v54
    %56 = vadd.xlane.f32.xlu0 %v55
    %v57 = vpop.xlane.xlu0 %56
    %v58 = vsel %vm53, %v40, 0.0
    %v59 = vadd.f32 %v39, %v58
    %60 = vadd.xlane.f32.xlu0 %v59
    %v61 = vpop.xlane.xlu0 %60
    %v62 = vsel %vm53, %v42, 0.0
    %v63 = vadd.f32 %v41, %v62
    %64 = vadd.xlane.f32.xlu0 %v63
    %v65 = vpop.xlane.xlu0 %64
    %v66 = vsel %vm53, %v44, 0.0
    %v67 = vadd.f32 %v43, %v66
    %68 = vadd.xlane.f32.xlu0 %v67
    %v69 = vpop.xlane.xlu0 %68
    %v70 = vsel %vm53, %v46, 0.0
    %v71 = vadd.f32 %v45, %v70
    %72 = vadd.xlane.f32.xlu0 %v71
    %v73 = vpop.xlane.xlu0 %72
    %v74 = vsel %vm53, %v48, 0.0
    %v75 = vadd.f32 %v47, %v74
    %76 = vadd.xlane.f32.xlu0 %v75
    %v77 = vpop.xlane.xlu0 %76
    %v78 = vsel %vm53, %v50, 0.0
    %v79 = vadd.f32 %v49, %v78
    %80 = vadd.xlane.f32.xlu0 %v79
    %v81 = vpop.xlane.xlu0 %80
    %v82 = vsel %vm53, %v52, 0.0
    %v83 = vadd.f32 %v51, %v82
    %84 = vadd.xlane.f32.xlu0 %v83
    %v85 = vpop.xlane.xlu0 %84
    %v86 = vmul.f32 %v57, 0.0051020407
    %v87 = vmul.f32 %v61, 0.0051020407
    %v88 = vmul.f32 %v65, 0.0051020407
    %v89 = vmul.f32 %v69, 0.0051020407
    %v90 = vmul.f32 %v73, 0.0051020407
    %v91 = vmul.f32 %v77, 0.0051020407
    %v92 = vmul.f32 %v81, 0.0051020407
    %v93 = vmul.f32 %v85, 0.0051020407
    %v94 = vld [vmem:[%s1] sm:$0xff]
    %v95 = vld [vmem:[%s1 + $0x8] sm:$0xff]
    %v96 = vld [vmem:[%s1 + $0x10] sm:$0xff]
    %v97 = vld [vmem:[%s1 + $0x18] sm:$0xff]
    %v98 = vld [vmem:[%s2] sm:$0x1]
    %v100 = vperm.slane %v98, 0
    %v110 = vlaneseq
    %v111 = vand.u32 %v110, 127
    %v112 = vperm.slane %v86, %v111
    %v113 = vadd.s32 %v111, 4294967288
    %v114 = vperm.slane %v87, %v113
    %vm115 = vcmask 130112
    %v116 = vsel %vm115, %v114, %v112
    %v117 = vadd.s32 %v111, 4294967280
    %v118 = vperm.slane %v88, %v117
    %vm119 = vcmask 195712
    %v120 = vsel %vm119, %v118, %v116
    %v121 = vadd.s32 %v111, 4294967272
    %v122 = vperm.slane %v89, %v121
    %vm123 = vcmask 261312
    %v124 = vsel %vm123, %v122, %v120
    %v125 = vperm.slane %v90, %v111
    %v126 = vperm.slane %v91, %v113
    %v127 = vsel %vm115, %v126, %v125
    %v128 = vperm.slane %v92, %v117
    %v129 = vsel %vm119, %v128, %v127
    %v130 = vperm.slane %v93, %v121
    %v131 = vsel %vm123, %v130, %v129
    %vm132 = vcmask 1041409
    %v133 = vsel %vm132, %v131, %v124
    %vm134 = vcmask 261120
    %v135 = vsel %vm134, %v133, 0
    %137 = vmatpush.msra.mxu0 0.0
    %138 = vmatpush.msra.mxu0 0.0
    %139 = vmatpush.msra.mxu0 0.0
    %140 = vmatpush.msra.mxu0 0.0
    %141 = vmatpush.msra.mxu0 0.0
    %142 = vmatpush.msra.mxu0 0.0
    %143 = vmatpush.msra.mxu0 0.0
    %144 = vmatpush.msra.mxu0 0.0
    %145 = vmatpush.msra.mxu0 0.0
    %146 = vmatpush.msra.mxu0 0.0
    %147 = vmatpush.msra.mxu0 0.0
    %148 = vmatpush.msra.mxu0 0.0
    %149 = vmatpush.msra.mxu0 %v97
    %150 = vmatpush.msra.mxu0 %v96
    %151 = vmatpush.msra.mxu0 %v95
    %152 = vmatpush.msra.mxu0 %v94
    %153 = vmatmul.f32.gmra.mxu0 %v135
    %v154 = vpop.f32.mrf.mxu0
    %v155 = vadd.f32 %v100, %v154
    %156 = vdwg.mxu0
    %v157 = vmax.f32 %v155, 0.0
    %v158 = vld [vmem:[%s3] sm:$0xff]
    %v159 = vld [vmem:[%s4] sm:$0x1]
    %v161 = vperm.slane %v159, 0
    %vm163 = vcmask 64512
    %v165 = vsel %vm163, %v157, 0
    %167 = vmatpush.msra.mxu0 0.0
    %168 = vmatpush.msra.mxu0 0.0
    %169 = vmatpush.msra.mxu0 0.0
    %170 = vmatpush.msra.mxu0 0.0
    %171 = vmatpush.msra.mxu0 0.0
    %172 = vmatpush.msra.mxu0 0.0
    %173 = vmatpush.msra.mxu0 0.0
    %174 = vmatpush.msra.mxu0 0.0
    %175 = vmatpush.msra.mxu0 0.0
    %176 = vmatpush.msra.mxu0 0.0
    %177 = vmatpush.msra.mxu0 0.0
    %178 = vmatpush.msra.mxu0 0.0
    %179 = vmatpush.msra.mxu0 0.0
    %180 = vmatpush.msra.mxu0 0.0
    %181 = vmatpush.msra.mxu0 0.0
    %182 = vmatpush.msra.mxu0 %v158
    %183 = vmatmul.f32.gmra.mxu0 %v165
    %v184 = vpop.f32.mrf.mxu0
    %v185 = vadd.f32 %v161, %v184
    %186 = vdwg.mxu0
    %v187 = vxor.u32 %v185, 2147483648
    %v188 = vmul.f32 %v187, 1.442695
    %v189 = vpow.pop %v188
    %v190 = vadd.f32 %v189, 1.0
    %v191 = vrcp.pop %v190
    %v192 = vmul.f32 %v190, %v191
    %v193 = vsub.f32 1.0, %v192
    %v194 = vmul.f32 %v191, %v193
    %v195 = vadd.f32 %v191, %v194
    %vm196 = vweird.f32 %v190
    %vm197 = vweird.f32 %v191
    %vm198 = vmor %vm196, %vm197
    %v199 = vsel %vm198, %v191, %v195
    %v200 = vand.u32 2147483647, %v190
    %vm201 = vcmp.eq.f32.partialorder %v200, 8.507059e+37
    %v202 = vand.u32 %v190, 2147483648
    %v203 = vor.u32 1.1754944e-38, %v202
    %v204 = vsel %vm201, %v203, %v199
    %v205 = vmul.f32 1.0, %v204
    %v206 = vperm.slane %v205, 0
    %v207 = vlaneseq
    %v208 = vshrl.u32 %v207, 7
    %210 = vset.pattern.permute.xlu0 %v208
    %211 = vperm.xlu0 %210, %v206
    %v212 = vpop.permute.xlu0 %211
    %v213 = vlaneseq
    %v214 = vshrl.u32 %v213, 7
    %v215 = vadd.s32 %v214, 8
    %216 = vset.pattern.permute.xlu0 %v215
    %217 = vperm.xlu0 %216, %v206
    %v218 = vpop.permute.xlu0 %217
    %v219 = vlaneseq
    %v220 = vshrl.u32 %v219, 7
    %v221 = vadd.s32 %v220, 16
    %222 = vset.pattern.permute.xlu0 %v221
    %223 = vperm.xlu0 %222, %v206
    %v224 = vpop.permute.xlu0 %223
    %v225 = vlaneseq
    %v226 = vshrl.u32 %v225, 7
    %v227 = vadd.s32 %v226, 24
    %228 = vset.pattern.permute.xlu0 %v227
    %229 = vperm.xlu0 %228, %v206
    %v230 = vpop.permute.xlu0 %229
    %v231 = vperm.slane %v205, 1
    %v232 = vlaneseq
    %v233 = vshrl.u32 %v232, 7
    %235 = vset.pattern.permute.xlu0 %v233
    %236 = vperm.xlu0 %235, %v231
    %v237 = vpop.permute.xlu0 %236
    %v238 = vlaneseq
    %v239 = vshrl.u32 %v238, 7
    %v240 = vadd.s32 %v239, 8
    %241 = vset.pattern.permute.xlu0 %v240
    %242 = vperm.xlu0 %241, %v231
    %v243 = vpop.permute.xlu0 %242
    %v244 = vlaneseq
    %v245 = vshrl.u32 %v244, 7
    %v246 = vadd.s32 %v245, 16
    %247 = vset.pattern.permute.xlu0 %v246
    %248 = vperm.xlu0 %247, %v231
    %v249 = vpop.permute.xlu0 %248
    %v250 = vlaneseq
    %v251 = vshrl.u32 %v250, 7
    %v252 = vadd.s32 %v251, 24
    %253 = vset.pattern.permute.xlu0 %v252
    %254 = vperm.xlu0 %253, %v231
    %v255 = vpop.permute.xlu0 %254
    %v256 = vmul.f32 %v37, %v212
    %v257 = vmul.f32 %v38, %v212
    %v258 = vmul.f32 %v39, %v218
    %v259 = vmul.f32 %v40, %v218
    %v260 = vmul.f32 %v41, %v224
    %v261 = vmul.f32 %v42, %v224
    %v262 = vmul.f32 %v43, %v230
    %v263 = vmul.f32 %v44, %v230
    %v264 = vmul.f32 %v45, %v237
    %v265 = vmul.f32 %v46, %v237
    %v266 = vmul.f32 %v47, %v243
    %v267 = vmul.f32 %v48, %v243
    %v268 = vmul.f32 %v49, %v249
    %v269 = vmul.f32 %v50, %v249
    %v270 = vmul.f32 %v51, %v255
    %v271 = vmul.f32 %v52, %v255
    %272 = vst [vmem:[#allocation5] sm:$0xff] %v256
    %273 = vst.msk [vmem:[#allocation5 + $0x8] sm:$0xff] %vm53, %v257
    %274 = vst [vmem:[#allocation5 + $0x10] sm:$0xff] %v258
    %275 = vst.msk [vmem:[#allocation5 + $0x18] sm:$0xff] %vm53, %v259
    %276 = vst [vmem:[#allocation5 + $0x20] sm:$0xff] %v260
    %277 = vst.msk [vmem:[#allocation5 + $0x28] sm:$0xff] %vm53, %v261
    %278 = vst [vmem:[#allocation5 + $0x30] sm:$0xff] %v262
    %279 = vst.msk [vmem:[#allocation5 + $0x38] sm:$0xff] %vm53, %v263
    %280 = vst [vmem:[#allocation5 + $0x40] sm:$0xff] %v264
    %281 = vst.msk [vmem:[#allocation5 + $0x48] sm:$0xff] %vm53, %v265
    %282 = vst [vmem:[#allocation5 + $0x50] sm:$0xff] %v266
    %283 = vst.msk [vmem:[#allocation5 + $0x58] sm:$0xff] %vm53, %v267
    %284 = vst [vmem:[#allocation5 + $0x60] sm:$0xff] %v268
    %285 = vst.msk [vmem:[#allocation5 + $0x68] sm:$0xff] %vm53, %v269
    %286 = vst [vmem:[#allocation5 + $0x70] sm:$0xff] %v270
    %287 = vst.msk [vmem:[#allocation5 + $0x78] sm:$0xff] %vm53, %v271
    // Predicated region
    $region26: #{tpu_custom_call.1} parent=1 // pred_check
      _
    $region27: #{tpu_custom_call.1} parent=1 // pred_check_branch
      %289 = sbr.rel (0) target = $region29
    $region28: #{tpu_custom_call.1} parent=1 // pred_region
      %291 = vsyncadd [#allocation4], 0
      %s292 = sshll.u32 [#allocation5], 4
      %s293 = int_to_ptr.vmem [resolvable:$true] %s292
      %s294 = sshll.u32 %s5, 4
      %s295 = int_to_ptr.hbm [resolvable:$true] %s294
      %300 = dma.vmem_to_hbm [thread:$0]  %s293, 2048, %s295, [#allocation4], 256, 256, 16
    $region29: #{tpu_custom_call.1} parent=1 // pred_fallthru
      _
    // Predicated region
    $region30: #{tpu_custom_call.1} parent=1 // pred_check
      _
    $region31: #{tpu_custom_call.1} parent=1 // pred_check_branch
      %302 = sbr.rel (0) target = $region33
    $region32: #{tpu_custom_call.1} parent=1 // pred_region
      %304 = dma.done [#allocation4], 2048
    $region33: #{tpu_custom_call.1} parent=1 // pred_fallthru
      _
    %305 = vsyncpa [#allocation3], 1
    %306 = vsyncpa [#allocation4], 1

</llo_original>
